<compile_context>
chip_gen: v6e
topology: v6e:2x2x1
jax: 0.10.0
libtpu: 0.0.40
codegen_flags: <defaults>
</compile_context>

<pallas_src>
import functools

import jax
import jax.numpy as jnp
from jax.experimental import pallas as pl
from jax.experimental.pallas import tpu as pltpu


def _round_up(a, b):
    return (a + b - 1) // b * b


def _mlp_kernel_factory(eps):
    def kernel(x_ref, ln_w_ref, wg_ref, wu_ref, wd_ref, o_ref, h_scr, acc_scr):
        f = pl.program_id(1)
        nf = pl.num_programs(1)

        # ---- first F step: RMSNorm (fp32 stats), cached for all F tiles ----
        @pl.when(f == 0)
        def _():
            x = x_ref[...].astype(jnp.float32)                     # (tm, H)
            var = jnp.mean(x * x, axis=-1, keepdims=True)           # (tm, 1)
            xn = x * jax.lax.rsqrt(var + eps)
            h_scr[...] = (ln_w_ref[...].astype(jnp.float32) * xn).astype(h_scr.dtype)

        # ---- gate / up projections for this F tile (MXU, f32 accumulate) ----
        h = h_scr[...]                                              # (tm, H)
        g = jnp.dot(h, wg_ref[...], preferred_element_type=jnp.float32)  # (tm, tf)
        u = jnp.dot(h, wu_ref[...], preferred_element_type=jnp.float32)  # (tm, tf)

        # ---- SwiGLU: silu(gate) * up (f32 elementwise; sigmoid -> EUP) ----
        a = (g * jax.nn.sigmoid(g)) * u                             # (tm, tf)

        # ---- partial down projection, accumulate in f32 ----
        part = jnp.dot(a.astype(wd_ref.dtype), wd_ref[...],
                       preferred_element_type=jnp.float32)          # (tm, H)

        @pl.when(f == 0)
        def _():
            acc_scr[...] = part

        @pl.when(f > 0)
        def _():
            acc_scr[...] += part

        # ---- last F step: add residual and write out ----
        @pl.when(f == nf - 1)
        def _():
            o_ref[...] = (acc_scr[...] + x_ref[...].astype(jnp.float32)
                          ).astype(o_ref.dtype)

    return kernel


@functools.partial(jax.jit, static_argnames=("eps", "tm", "tf"))
def llama_mlp_tp_forward(hidden_states, ln_weight, w_gate, w_up, w_down,
                         *, eps=1e-6, tm=256, tf=512):
    """hidden_states: [B, S, H]; ln_weight: [H]; w_gate/w_up: [H, F]; w_down: [F, H]."""
    B, S, H = hidden_states.shape
    F = w_gate.shape[1]
    T = B * S
    dtype = hidden_states.dtype

    # --- tile sizing (clamped for small inputs, padded for raggedness) ---
    sub = 16 if dtype == jnp.bfloat16 else 8          # sublane granularity
    tm = max(sub, min(tm, _round_up(T, sub)))
    T_pad = _round_up(T, tm)

    tf = max(128, min(tf, _round_up(F, 128)))
    F_pad = _round_up(F, tf)

    x2d = hidden_states.reshape(T, H)
    if T_pad != T:
        # zero-padded rows flow through safely (rsqrt(eps) * 0 = 0) and are sliced off.
        x2d = jnp.pad(x2d, ((0, T_pad - T), (0, 0)))
    ln_w2d = ln_weight.reshape(1, H)
    if F_pad != F:
        # zero-padded F columns contribute silu(0)*0 = 0 to the down projection.
        w_gate = jnp.pad(w_gate, ((0, 0), (0, F_pad - F)))
        w_up = jnp.pad(w_up, ((0, 0), (0, F_pad - F)))
        w_down = jnp.pad(w_down, ((0, F_pad - F), (0, 0)))

    grid = (T_pad // tm, F_pad // tf)                 # reduction (F) axis last

    # --- explicit VMEM budget: weight tiles (double-buffered) + act tiles + scratch ---
    act_bytes = jnp.dtype(dtype).itemsize
    w_bytes = jnp.dtype(w_gate.dtype).itemsize
    weights_vmem = 3 * H * tf * w_bytes * 2           # gate/up/down tiles, 2 buffers
    acts_vmem = 2 * tm * H * act_bytes * 2            # x + out tiles, 2 buffers
    scratch_vmem = tm * H * (act_bytes + 4)           # h scratch + f32 accumulator
    inter_vmem = 4 * tm * tf * 4                      # g, u, a, partial f32 intermediates
    vmem_limit = int(1.3 * (weights_vmem + acts_vmem + scratch_vmem + inter_vmem))
    vmem_limit = min(max(vmem_limit, 32 << 20), 128 << 20)

    cost = pl.CostEstimate(
        flops=2 * T_pad * H * F_pad * 3,
        transcendentals=T_pad * F_pad,                # sigmoid
        bytes_accessed=(3 * H * F_pad * w_bytes) * (T_pad // tm)
                       + 2 * T_pad * H * act_bytes,
    )

    out = pl.pallas_call(
        _mlp_kernel_factory(eps),
        out_shape=jax.ShapeDtypeStruct((T_pad, H), dtype),
        grid_spec=pltpu.PrefetchScalarGridSpec(
            num_scalar_prefetch=0,
            grid=grid,
            in_specs=[
                pl.BlockSpec((tm, H), lambda i, f: (i, 0)),   # x tile (resident over F)
                pl.BlockSpec((1, H), lambda i, f: (0, 0)),    # RMSNorm weight
                pl.BlockSpec((H, tf), lambda i, f: (0, f)),   # W_gate tile
                pl.BlockSpec((H, tf), lambda i, f: (0, f)),   # W_up tile
                pl.BlockSpec((tf, H), lambda i, f: (f, 0)),   # W_down tile
            ],
            out_specs=pl.BlockSpec((tm, H), lambda i, f: (i, 0)),
            scratch_shapes=[
                pltpu.VMEM((tm, H), dtype),        # normalized hidden, reused over F
                pltpu.VMEM((tm, H), jnp.float32),  # down-proj accumulator
            ],
        ),
        compiler_params=pltpu.CompilerParams(
            dimension_semantics=("parallel", "arbitrary"),
            vmem_limit_bytes=vmem_limit,
        ),
        cost_estimate=cost,
    )(x2d, ln_w2d, w_gate, w_up, w_down)

    return out[:T].reshape(B, S, H)


def _reference(hidden_states, ln_weight, w_gate, w_up, w_down, eps=1e-6):
    x = hidden_states.astype(jnp.float32)
    var = jnp.mean(x * x, axis=-1, keepdims=True)
    h = ln_weight.astype(jnp.float32) * (x * jax.lax.rsqrt(var + eps))
    g = h @ w_gate.astype(jnp.float32)
    u = h @ w_up.astype(jnp.float32)
    a = jax.nn.silu(g) * u
    return (a @ w_down.astype(jnp.float32) + x).astype(hidden_states.dtype)


if __name__ == "__main__":
    # Small shapes consistent with the module's forward.
    batch, seq, hidden, ffn = 2, 8, 128, 256
    eps = 1e-6

    key = jax.random.PRNGKey(0)
    kx, kg, ku, kd = jax.random.split(key, 4)

    x = jax.random.normal(kx, (batch, seq, hidden), dtype=jnp.float32)
    ln_w = jnp.ones((hidden,), dtype=jnp.float32)             # RMSNorm init = ones
    w_gate = jax.random.normal(kg, (hidden, ffn), dtype=jnp.float32) * 0.02
    w_up = jax.random.normal(ku, (hidden, ffn), dtype=jnp.float32) * 0.02
    w_down = jax.random.normal(kd, (ffn, hidden), dtype=jnp.float32) * 0.02

    # ---- f32 correctness check ----
    out = llama_mlp_tp_forward(x, ln_w, w_gate, w_up, w_down, eps=eps)
    out = jax.block_until_ready(out)
    ref = _reference(x, ln_w, w_gate, w_up, w_down, eps=eps)
    assert out.shape == x.shape and out.dtype == x.dtype
    assert jnp.allclose(out, ref, atol=1e-4, rtol=1e-4)

    # ---- bf16 path (the production dtype): loose-tolerance smoke check ----
    xb = x.astype(jnp.bfloat16)
    out_bf16 = llama_mlp_tp_forward(
        xb, ln_w.astype(jnp.bfloat16),
        w_gate.astype(jnp.bfloat16), w_up.astype(jnp.bfloat16),
        w_down.astype(jnp.bfloat16), eps=eps)
    out_bf16 = jax.block_until_ready(out_bf16)
    ref_bf16 = _reference(xb, ln_w.astype(jnp.bfloat16),
                          w_gate.astype(jnp.bfloat16), w_up.astype(jnp.bfloat16),
                          w_down.astype(jnp.bfloat16), eps=eps)
    assert out_bf16.dtype == jnp.bfloat16
    assert jnp.allclose(out_bf16.astype(jnp.float32),
                        ref_bf16.astype(jnp.float32), atol=1e-1, rtol=1e-1)

    print("KERNEL_OK")
</pallas_src>

<mosaic_0001>
module attributes {stable_mosaic.version = 11 : i64} {
  func.func @kernel(%arg0: i32, %arg1: i32, %arg2: memref<16x128xf32, #tpu.memory_space<vmem>>, %arg3: memref<1x128xf32, #tpu.memory_space<vmem>>, %arg4: memref<128x256xf32, #tpu.memory_space<vmem>>, %arg5: memref<128x256xf32, #tpu.memory_space<vmem>>, %arg6: memref<256x128xf32, #tpu.memory_space<vmem>>, %arg7: memref<16x128xf32, #tpu.memory_space<vmem>>, %arg8: memref<16x128xf32, #tpu.memory_space<vmem>>, %arg9: memref<16x128xf32, #tpu.memory_space<vmem>>) attributes {dimension_semantics = [#tpu.dimension_semantics<parallel>, #tpu.dimension_semantics<arbitrary>], iteration_bounds = array<i64: 1, 1>, scalar_prefetch = 0 : i64, scratch_operands = 2 : i64, tpu.core_type = #tpu.core_type<tc>, window_params = [{transform_indices = @transform_0, window_bounds = array<i64: 16, 128>}, {pipeline_mode = #tpu.pipeline_mode<synchronous>, transform_indices = @transform_1, window_bounds = array<i64: 1, 128>}, {transform_indices = @transform_2, window_bounds = array<i64: 128, 256>}, {transform_indices = @transform_3, window_bounds = array<i64: 128, 256>}, {transform_indices = @transform_4, window_bounds = array<i64: 256, 128>}, {transform_indices = @transform_5, window_bounds = array<i64: 16, 128>}]} {
    %c0_i32 = arith.constant 0 : i32
    %0 = arith.cmpi eq, %arg1, %c0_i32 : i32
    %1 = arith.extui %0 : i1 to i32
    %c0_i32_0 = arith.constant 0 : i32
    %2 = arith.cmpi ne, %1, %c0_i32_0 : i32
    scf.if %2 {
      %c0_17 = arith.constant 0 : index
      %c0_18 = arith.constant 0 : index
      %26 = vector.load %arg2[%c0_17, %c0_18] : memref<16x128xf32, #tpu.memory_space<vmem>>, vector<16x128xf32>
      %27 = arith.mulf %26, %26 : vector<16x128xf32>
      %cst_19 = arith.constant dense<0.000000e+00> : vector<16xf32>
      %28 = vector.multi_reduction <add>, %27, %cst_19 [1] : vector<16x128xf32> to vector<16xf32>
      %29 = vector.shape_cast %28 : vector<16xf32> to vector<16x1xf32>
      %cst_20 = arith.constant 1.280000e+02 : f32
      %30 = vector.broadcast %cst_20 : f32 to vector<16x1xf32>
      %31 = arith.divf %29, %30 : vector<16x1xf32>
      %cst_21 = arith.constant 9.99999997E-7 : f32
      %32 = vector.broadcast %cst_21 : f32 to vector<16x1xf32>
      %33 = arith.addf %31, %32 : vector<16x1xf32>
      %34 = math.rsqrt %33 : vector<16x1xf32>
      %35 = vector.broadcast %34 : vector<16x1xf32> to vector<16x128xf32>
      %36 = arith.mulf %26, %35 : vector<16x128xf32>
      %c0_22 = arith.constant 0 : index
      %c0_23 = arith.constant 0 : index
      %37 = vector.load %arg3[%c0_22, %c0_23] : memref<1x128xf32, #tpu.memory_space<vmem>>, vector<1x128xf32>
      %38 = vector.broadcast %37 : vector<1x128xf32> to vector<16x128xf32>
      %39 = arith.mulf %38, %36 : vector<16x128xf32>
      %c0_24 = arith.constant 0 : index
      %c0_25 = arith.constant 0 : index
      %40 = vector.load %arg8[%c0_24, %c0_25] : memref<16x128xf32, #tpu.memory_space<vmem>>, vector<16x128xf32>
      tpu.vector_store %arg8[%c0_24, %c0_25], %39 {strides = array<i32>} : memref<16x128xf32, #tpu.memory_space<vmem>>, vector<16x128xf32>,
    } else {
    }
    %c0 = arith.constant 0 : index
    %c0_1 = arith.constant 0 : index
    %3 = vector.load %arg8[%c0, %c0_1] : memref<16x128xf32, #tpu.memory_space<vmem>>, vector<16x128xf32>
    %c0_2 = arith.constant 0 : index
    %c0_3 = arith.constant 0 : index
    %4 = vector.load %arg4[%c0_2, %c0_3] : memref<128x256xf32, #tpu.memory_space<vmem>>, vector<128x256xf32>
    %cst = arith.constant dense<0.000000e+00> : vector<16x256xf32>
    %5 = tpu.matmul %3, %4, %cst {dimension_numbers = #tpu.dot_dimension_numbers<[1], [0], [0], [1], [0, 0, 1, 1], [], []>} : vector<16x128xf32>, vector<128x256xf32>, vector<16x256xf32> -> vector<16x256xf32>
    %c0_4 = arith.constant 0 : index
    %c0_5 = arith.constant 0 : index
    %6 = vector.load %arg5[%c0_4, %c0_5] : memref<128x256xf32, #tpu.memory_space<vmem>>, vector<128x256xf32>
    %cst_6 = arith.constant dense<0.000000e+00> : vector<16x256xf32>
    %7 = tpu.matmul %3, %6, %cst_6 {dimension_numbers = #tpu.dot_dimension_numbers<[1], [0], [0], [1], [0, 0, 1, 1], [], []>} : vector<16x128xf32>, vector<128x256xf32>, vector<16x256xf32> -> vector<16x256xf32>
    %8 = arith.negf %5 : vector<16x256xf32>
    %9 = math.exp %8 : vector<16x256xf32>
    %cst_7 = arith.constant 1.000000e+00 : f32
    %10 = vector.broadcast %cst_7 : f32 to vector<16x256xf32>
    %11 = arith.addf %10, %9 : vector<16x256xf32>
    %12 = arith.divf %10, %11 : vector<16x256xf32>
    %13 = arith.mulf %5, %12 : vector<16x256xf32>
    %14 = arith.mulf %13, %7 : vector<16x256xf32>
    %c0_8 = arith.constant 0 : index
    %c0_9 = arith.constant 0 : index
    %15 = vector.load %arg6[%c0_8, %c0_9] : memref<256x128xf32, #tpu.memory_space<vmem>>, vector<256x128xf32>
    %cst_10 = arith.constant dense<0.000000e+00> : vector<16x128xf32>
    %16 = tpu.matmul %14, %15, %cst_10 {dimension_numbers = #tpu.dot_dimension_numbers<[1], [0], [0], [1], [0, 0, 1, 1], [], []>} : vector<16x256xf32>, vector<256x128xf32>, vector<16x128xf32> -> vector<16x128xf32>
    %c0_i32_11 = arith.constant 0 : i32
    %17 = arith.cmpi eq, %arg1, %c0_i32_11 : i32
    %18 = arith.extui %17 : i1 to i32
    %c0_i32_12 = arith.constant 0 : i32
    %19 = arith.cmpi ne, %18, %c0_i32_12 : i32
    scf.if %19 {
      %c0_17 = arith.constant 0 : index
      %c0_18 = arith.constant 0 : index
      %26 = vector.load %arg9[%c0_17, %c0_18] : memref<16x128xf32, #tpu.memory_space<vmem>>, vector<16x128xf32>
      tpu.vector_store %arg9[%c0_17, %c0_18], %16 {strides = array<i32>} : memref<16x128xf32, #tpu.memory_space<vmem>>, vector<16x128xf32>,
    } else {
    }
    %c0_i32_13 = arith.constant 0 : i32
    %20 = arith.cmpi sgt, %arg1, %c0_i32_13 : i32
    %21 = arith.extui %20 : i1 to i32
    %c0_i32_14 = arith.constant 0 : i32
    %22 = arith.cmpi ne, %21, %c0_i32_14 : i32
    scf.if %22 {
      %c0_17 = arith.constant 0 : index
      %c0_18 = arith.constant 0 : index
      %26 = vector.load %arg9[%c0_17, %c0_18] : memref<16x128xf32, #tpu.memory_space<vmem>>, vector<16x128xf32>
      %27 = arith.addf %26, %16 : vector<16x128xf32>
      %c0_19 = arith.constant 0 : index
      %c0_20 = arith.constant 0 : index
      %28 = vector.load %arg9[%c0_19, %c0_20] : memref<16x128xf32, #tpu.memory_space<vmem>>, vector<16x128xf32>
      tpu.vector_store %arg9[%c0_19, %c0_20], %27 {strides = array<i32>} : memref<16x128xf32, #tpu.memory_space<vmem>>, vector<16x128xf32>,
    } else {
    }
    %c0_i32_15 = arith.constant 0 : i32
    %23 = arith.cmpi eq, %arg1, %c0_i32_15 : i32
    %24 = arith.extui %23 : i1 to i32
    %c0_i32_16 = arith.constant 0 : i32
    %25 = arith.cmpi ne, %24, %c0_i32_16 : i32
    scf.if %25 {
      %c0_17 = arith.constant 0 : index
      %c0_18 = arith.constant 0 : index
      %26 = vector.load %arg9[%c0_17, %c0_18] : memref<16x128xf32, #tpu.memory_space<vmem>>, vector<16x128xf32>
      %c0_19 = arith.constant 0 : index
      %c0_20 = arith.constant 0 : index
      %27 = vector.load %arg2[%c0_19, %c0_20] : memref<16x128xf32, #tpu.memory_space<vmem>>, vector<16x128xf32>
      %28 = arith.addf %26, %27 : vector<16x128xf32>
      %c0_21 = arith.constant 0 : index
      %c0_22 = arith.constant 0 : index
      %29 = vector.load %arg7[%c0_21, %c0_22] : memref<16x128xf32, #tpu.memory_space<vmem>>, vector<16x128xf32>
      tpu.vector_store %arg7[%c0_21, %c0_22], %28 {strides = array<i32>} : memref<16x128xf32, #tpu.memory_space<vmem>>, vector<16x128xf32>,
    } else {
    }
    return
  }
  func.func @transform_0(%arg0: i32, %arg1: i32) -> (i32, i32) {
    %c0_i32 = arith.constant 0 : i32
    %c0_i32_0 = arith.constant 0 : i32
    return %arg0, %c0_i32 : i32, i32
  }
  func.func @transform_1(%arg0: i32, %arg1: i32) -> (i32, i32) {
    %c0_i32 = arith.constant 0 : i32
    %c0_i32_0 = arith.constant 0 : i32
    %c0_i32_1 = arith.constant 0 : i32
    return %c0_i32, %c0_i32_0 : i32, i32
  }
  func.func @transform_2(%arg0: i32, %arg1: i32) -> (i32, i32) {
    %c0_i32 = arith.constant 0 : i32
    %c0_i32_0 = arith.constant 0 : i32
    return %c0_i32, %arg1 : i32, i32
  }
  func.func @transform_3(%arg0: i32, %arg1: i32) -> (i32, i32) {
    %c0_i32 = arith.constant 0 : i32
    %c0_i32_0 = arith.constant 0 : i32
    return %c0_i32, %arg1 : i32, i32
  }
  func.func @transform_4(%arg0: i32, %arg1: i32) -> (i32, i32) {
    %c0_i32 = arith.constant 0 : i32
    %c0_i32_0 = arith.constant 0 : i32
    return %arg1, %c0_i32 : i32, i32
  }
  func.func @transform_5(%arg0: i32, %arg1: i32) -> (i32, i32) {
    %c0_i32 = arith.constant 0 : i32
    %c0_i32_0 = arith.constant 0 : i32
    return %arg0, %c0_i32 : i32, i32
  }
}

</mosaic_0001>

<llo_original>
// kernel: llama_mlp_tp_forward.1
$region0: #{llama_mlp_tp_forward.1}
  #allocation0 [shape = 'u32[]', space=smem, size = 0x4, offset = 0x4, fixed_abs, tag = 'smem constant byte address 0x4 - core index']
  #allocation1 [shape = 'u32[144,128]{1,0:T(1,128)}', space=vmem, size = 0x12000, scoped, tag = 'internal scratch']
  #allocation2 [shape = 'f32[16,128]{1,0:T(8,128)}', space=vmem, size = 0x2000, scoped, tag = 'scratch operand']
  #allocation3 [shape = 'f32[16,128]{1,0:T(8,128)}', space=vmem, size = 0x2000, scoped, tag = 'scratch operand']
  %s0 = inlined_call_operand.hbm [shape: f32[16,128], index: 0, kind: input, shape index: {}]
  %s1 = inlined_call_operand.vmem [shape: f32[1,128], index: 1, kind: input, shape index: {}]
  %s2 = inlined_call_operand.hbm [shape: f32[128,256], index: 2, kind: input, shape index: {}]
  %s3 = inlined_call_operand.hbm [shape: f32[128,256], index: 3, kind: input, shape index: {}]
  %s4 = inlined_call_operand.hbm [shape: f32[256,128], index: 4, kind: input, shape index: {}]
  %s5 = inlined_call_operand.hbm [shape: f32[16,128], index: 5, kind: output, shape index: {}]
  %s6 = sld [smem:[#allocation0]]
  $region62: #{llama_mlp_tp_forward.1} parent=0
    _
  %s8 = ssub.s32 1, %s6
  %s9 = scalar_select 0, %s8, %s6
  $region1: #{llama_mlp_tp_forward.1} parent=0
    #allocation4 [shape = 'u8[8192]{0}', space=vmem, size = 0x2000, scoped, tag = 'input window, operand 0, single buffered']
    #allocation5 [shape = 's32[1]{0}', space=sflag, size = 0x4, scoped, tag = 'scoped memory for llama_mlp_tp_forward.1']
    #allocation6 [shape = 's32[1]{0}', space=sflag, size = 0x4, scoped, tag = 'scoped memory for llama_mlp_tp_forward.1']
    #allocation7 [shape = 'u8[131072]{0}', space=vmem, size = 0x20000, scoped, tag = 'input window, operand 2, single buffered']
    #allocation8 [shape = 's32[1]{0}', space=sflag, size = 0x4, scoped, tag = 'scoped memory for llama_mlp_tp_forward.1']
    #allocation9 [shape = 'u8[131072]{0}', space=vmem, size = 0x20000, scoped, tag = 'input window, operand 3, single buffered']
    #allocation10 [shape = 'u8[131072]{0}', space=vmem, size = 0x20000, scoped, tag = 'input window, operand 4, single buffered']
    #allocation11 [shape = 's32[1]{0}', space=sflag, size = 0x4, scoped, tag = 'scoped memory for llama_mlp_tp_forward.1']
    #allocation12 [shape = 'u8[8192]{0}', space=vmem, size = 0x2000, scoped, tag = 'output window, operand 0, single buffered']
    %10 = vsyncpa [#allocation5], 0
    %11 = vsyncpa [#allocation8], 0
    %12 = vsyncpa [#allocation11], 0
    %13 = vsyncpa [#allocation6], 0
    // Predicated region
    $region2: #{llama_mlp_tp_forward.1} parent=1 // pred_check
      _
    $region3: #{llama_mlp_tp_forward.1} parent=1 // pred_check_branch
      %15 = sbr.rel (0) target = $region5
    $region4: #{llama_mlp_tp_forward.1} parent=1 // pred_region
      %s17 = ssub.s32 256, 256
      %18 = vsyncadd [#allocation5], %s17
      %s19 = sshll.u32 [#allocation4], 4
      %s20 = int_to_ptr.vmem [resolvable:$true] %s19
      %25 = dma.hbm_to_vmem [thread:$0]  %s0, 256, %s20, [#allocation5], 128, 128, 8
    $region5: #{llama_mlp_tp_forward.1} parent=1 // pred_fallthru
      _
    // Predicated region
    $region6: #{llama_mlp_tp_forward.1} parent=1 // pred_check
      _
    $region7: #{llama_mlp_tp_forward.1} parent=1 // pred_check_branch
      %27 = sbr.rel (0) target = $region9
    $region8: #{llama_mlp_tp_forward.1} parent=1 // pred_region
      _
    $region9: #{llama_mlp_tp_forward.1} parent=1 // pred_fallthru
      _
    // Predicated region
    $region10: #{llama_mlp_tp_forward.1} parent=1 // pred_check
      _
    $region11: #{llama_mlp_tp_forward.1} parent=1 // pred_check_branch
      %29 = sbr.rel (0) target = $region13
    $region12: #{llama_mlp_tp_forward.1} parent=1 // pred_region
      %s31 = ssub.s32 4096, 4096
      %32 = vsyncadd [#allocation8], %s31
      %s33 = sshll.u32 [#allocation7], 4
      %s34 = int_to_ptr.vmem [resolvable:$true] %s33
      %39 = dma.hbm_to_vmem [thread:$0]  %s2, 4096, %s34, [#allocation8], 256, 256, 16
    $region13: #{llama_mlp_tp_forward.1} parent=1 // pred_fallthru
      _
    // Predicated region
    $region14: #{llama_mlp_tp_forward.1} parent=1 // pred_check
      _
    $region15: #{llama_mlp_tp_forward.1} parent=1 // pred_check_branch
      %41 = sbr.rel (0) target = $region17
    $region16: #{llama_mlp_tp_forward.1} parent=1 // pred_region
      %s43 = ssub.s32 4096, 4096
      %44 = vsyncadd [#allocation8], %s43
      %s45 = sshll.u32 [#allocation9], 4
      %s46 = int_to_ptr.vmem [resolvable:$true] %s45
      %51 = dma.hbm_to_vmem [thread:$0]  %s3, 4096, %s46, [#allocation8], 256, 256, 16
    $region17: #{llama_mlp_tp_forward.1} parent=1 // pred_fallthru
      _
    // Predicated region
    $region18: #{llama_mlp_tp_forward.1} parent=1 // pred_check
      _
    $region19: #{llama_mlp_tp_forward.1} parent=1 // pred_check_branch
      %53 = sbr.rel (0) target = $region21
    $region20: #{llama_mlp_tp_forward.1} parent=1 // pred_region
      %s55 = ssub.s32 4096, 4096
      %56 = vsyncadd [#allocation11], %s55
      %s57 = sshll.u32 [#allocation10], 4
      %s58 = int_to_ptr.vmem [resolvable:$true] %s57
      %63 = dma.hbm_to_vmem [thread:$0]  %s4, 4096, %s58, [#allocation11], 128, 128, 8
    $region21: #{llama_mlp_tp_forward.1} parent=1 // pred_fallthru
      _
    // Predicated region
    $region22: #{llama_mlp_tp_forward.1} parent=1 // pred_check
      _
    $region23: #{llama_mlp_tp_forward.1} parent=1 // pred_check_branch
      %65 = sbr.rel (0) target = $region25
    $region24: #{llama_mlp_tp_forward.1} parent=1 // pred_region
      %66 = dma.done [#allocation5], 256
    $region25: #{llama_mlp_tp_forward.1} parent=1 // pred_fallthru
      _
    // Predicated region
    $region26: #{llama_mlp_tp_forward.1} parent=1 // pred_check
      _
    $region27: #{llama_mlp_tp_forward.1} parent=1 // pred_check_branch
      %68 = sbr.rel (0) target = $region29
    $region28: #{llama_mlp_tp_forward.1} parent=1 // pred_region
      %69 = dma.done [#allocation8], 4096
    $region29: #{llama_mlp_tp_forward.1} parent=1 // pred_fallthru
      _
    // Predicated region
    $region30: #{llama_mlp_tp_forward.1} parent=1 // pred_check
      _
    $region31: #{llama_mlp_tp_forward.1} parent=1 // pred_check_branch
      %71 = sbr.rel (0) target = $region33
    $region32: #{llama_mlp_tp_forward.1} parent=1 // pred_region
      %72 = dma.done [#allocation8], 4096
    $region33: #{llama_mlp_tp_forward.1} parent=1 // pred_fallthru
      _
    // Predicated region
    $region34: #{llama_mlp_tp_forward.1} parent=1 // pred_check
      _
    $region35: #{llama_mlp_tp_forward.1} parent=1 // pred_check_branch
      %74 = sbr.rel (0) target = $region37
    $region36: #{llama_mlp_tp_forward.1} parent=1 // pred_region
      %75 = dma.done [#allocation11], 4096
    $region37: #{llama_mlp_tp_forward.1} parent=1 // pred_fallthru
      _
    %p76 = scmp.eq.s32.totalorder 0, 0
    // Predicated region
    $region38: #{llama_mlp_tp_forward.1} parent=1 // pred_check
      %p77 = pneg %p76
    $region39: #{llama_mlp_tp_forward.1} parent=1 // pred_check_branch
      %79 = sbr.rel (%p77) target = $region41
    $region40: #{llama_mlp_tp_forward.1} parent=1 // pred_region
      %v80 = vld [vmem:[#allocation4] sm:$0xff]
      %v81 = vld [vmem:[#allocation4 + $0x8] sm:$0xff]
      %v82 = vmul.f32 %v80, %v80
      %v83 = vmul.f32 %v81, %v81
      %84 = vadd.xlane.f32.xlu0 %v82
      %v85 = vpop.xlane.xlu0 %84
      %86 = vadd.xlane.f32.xlu0 %v83
      %v87 = vpop.xlane.xlu0 %86
      %v88 = vrcp.pop 128.0
      %v89 = vmul.f32 %v85, %v88
      %v90 = vmul.f32 %v87, %v88
      %v91 = vadd.f32 %v89, 1e-06
      %v92 = vadd.f32 %v90, 1e-06
      %v93 = vrsqrt.pop %v91
      %v94 = vrsqrt.pop %v92
      %v95 = vmul.f32 %v80, %v93
      %v96 = vmul.f32 %v81, %v94
      %v97 = vld [vmem:[%s1] sm:$0x1]
      %v99 = vlaneseq
      %v100 = vshrl.u32 %v99, 7
      %v101 = vsub.s32 0, %v100
      %v102 = vrot.slane %v97, %v101
      %v104 = vmul.f32 %v102, %v95
      %v105 = vmul.f32 %v102, %v96
      %106 = vst [vmem:[#allocation2] sm:$0xff] %v104
      %107 = vst [vmem:[#allocation2 + $0x8] sm:$0xff] %v105
    $region41: #{llama_mlp_tp_forward.1} parent=1 // pred_fallthru
      _
    %v108 = vld [vmem:[#allocation2] sm:$0xff]
    %v109 = vld [vmem:[#allocation2 + $0x8] sm:$0xff]
    %v110 = vld [vmem:[#allocation7] sm:$0xff]
    %v111 = vld [vmem:[#allocation7 + $0x8] sm:$0xff]
    %v112 = vld [vmem:[#allocation7 + $0x10] sm:$0xff]
    %v113 = vld [vmem:[#allocation7 + $0x18] sm:$0xff]
    %v114 = vld [vmem:[#allocation7 + $0x20] sm:$0xff]
    %v115 = vld [vmem:[#allocation7 + $0x28] sm:$0xff]
    %v116 = vld [vmem:[#allocation7 + $0x30] sm:$0xff]
    %v117 = vld [vmem:[#allocation7 + $0x38] sm:$0xff]
    %v118 = vld [vmem:[#allocation7 + $0x40] sm:$0xff]
    %v119 = vld [vmem:[#allocation7 + $0x48] sm:$0xff]
    %v120 = vld [vmem:[#allocation7 + $0x50] sm:$0xff]
    %v121 = vld [vmem:[#allocation7 + $0x58] sm:$0xff]
    %v122 = vld [vmem:[#allocation7 + $0x60] sm:$0xff]
    %v123 = vld [vmem:[#allocation7 + $0x68] sm:$0xff]
    %v124 = vld [vmem:[#allocation7 + $0x70] sm:$0xff]
    %v125 = vld [vmem:[#allocation7 + $0x78] sm:$0xff]
    %v126 = vld [vmem:[#allocation7 + $0x80] sm:$0xff]
    %v127 = vld [vmem:[#allocation7 + $0x88] sm:$0xff]
    %v128 = vld [vmem:[#allocation7 + $0x90] sm:$0xff]
    %v129 = vld [vmem:[#allocation7 + $0x98] sm:$0xff]
    %v130 = vld [vmem:[#allocation7 + $0xa0] sm:$0xff]
    %v131 = vld [vmem:[#allocation7 + $0xa8] sm:$0xff]
    %v132 = vld [vmem:[#allocation7 + $0xb0] sm:$0xff]
    %v133 = vld [vmem:[#allocation7 + $0xb8] sm:$0xff]
    %v134 = vld [vmem:[#allocation7 + $0xc0] sm:$0xff]
    %v135 = vld [vmem:[#allocation7 + $0xc8] sm:$0xff]
    %v136 = vld [vmem:[#allocation7 + $0xd0] sm:$0xff]
    %v137 = vld [vmem:[#allocation7 + $0xd8] sm:$0xff]
    %v138 = vld [vmem:[#allocation7 + $0xe0] sm:$0xff]
    %v139 = vld [vmem:[#allocation7 + $0xe8] sm:$0xff]
    %v140 = vld [vmem:[#allocation7 + $0xf0] sm:$0xff]
    %v141 = vld [vmem:[#allocation7 + $0xf8] sm:$0xff]
    %142 = vmatprep.subr.mxu0 %v141
    %143 = vmatpush1.msra.mxu0 %v140
    %144 = vmatprep.subr.mxu0 %v139
    %145 = vmatpush1.msra.mxu0 %v138
    %146 = vmatprep.subr.mxu0 %v137
    %147 = vmatpush1.msra.mxu0 %v136
    %148 = vmatprep.subr.mxu0 %v135
    %149 = vmatpush1.msra.mxu0 %v134
    %150 = vmatprep.subr.mxu0 %v133
    %151 = vmatpush1.msra.mxu0 %v132
    %152 = vmatprep.subr.mxu0 %v131
    %153 = vmatpush1.msra.mxu0 %v130
    %154 = vmatprep.subr.mxu0 %v129
    %155 = vmatpush1.msra.mxu0 %v128
    %156 = vmatprep.subr.mxu0 %v127
    %157 = vmatpush1.msra.mxu0 %v126
    %158 = vmatprep.subr.mxu0 %v125
    %159 = vmatpush1.msra.mxu0 %v124
    %160 = vmatprep.subr.mxu0 %v123
    %161 = vmatpush1.msra.mxu0 %v122
    %162 = vmatprep.subr.mxu0 %v121
    %163 = vmatpush1.msra.mxu0 %v120
    %164 = vmatprep.subr.mxu0 %v119
    %165 = vmatpush1.msra.mxu0 %v118
    %166 = vmatprep.subr.mxu0 %v117
    %167 = vmatpush1.msra.mxu0 %v116
    %168 = vmatprep.subr.mxu0 %v115
    %169 = vmatpush1.msra.mxu0 %v114
    %170 = vmatprep.subr.mxu0 %v113
    %171 = vmatpush1.msra.mxu0 %v112
    %172 = vmatprep.subr.mxu0 %v111
    %173 = vmatpush1.msra.mxu0 %v110
    %174 = vmatprep.subr.mxu0 0.0
    %175 = vmatpush2.msra.mxu0 0.0
    %176 = vmatprep.subr.mxu0 0.0
    %177 = vmatpush2.msra.mxu0 0.0
    %178 = vmatprep.subr.mxu0 0.0
    %179 = vmatpush2.msra.mxu0 0.0
    %180 = vmatprep.subr.mxu0 0.0
    %181 = vmatpush2.msra.mxu0 0.0
    %182 = vmatprep.subr.mxu0 0.0
    %183 = vmatpush2.msra.mxu0 0.0
    %184 = vmatprep.subr.mxu0 0.0
    %185 = vmatpush2.msra.mxu0 0.0
    %186 = vmatprep.subr.mxu0 0.0
    %187 = vmatpush2.msra.mxu0 0.0
    %188 = vmatprep.subr.mxu0 0.0
    %189 = vmatpush2.msra.mxu0 0.0
    %190 = vmatprep.subr.mxu0 0.0
    %191 = vmatpush2.msra.mxu0 0.0
    %192 = vmatprep.subr.mxu0 0.0
    %193 = vmatpush2.msra.mxu0 0.0
    %194 = vmatprep.subr.mxu0 0.0
    %195 = vmatpush2.msra.mxu0 0.0
    %196 = vmatprep.subr.mxu0 0.0
    %197 = vmatpush2.msra.mxu0 0.0
    %198 = vmatprep.subr.mxu0 0.0
    %199 = vmatpush2.msra.mxu0 0.0
    %200 = vmatprep.subr.mxu0 0.0
    %201 = vmatpush2.msra.mxu0 0.0
    %202 = vmatprep.subr.mxu0 0.0
    %203 = vmatpush2.msra.mxu0 0.0
    %204 = vmatprep.subr.mxu0 0.0
    %205 = vmatpush2.msra.mxu0 0.0
    %206 = vmatprep.mubr.f32.mxu0 0.0
    %207 = vmatmul.mubr.f32.gmra.mxu0 %v108
    %v208 = vpop.f32.mrf.mxu0
    %v209 = vadd.f32 0.0, %v208
    %v210 = vpop.f32.mrf.mxu0
    %v211 = vadd.f32 0.0, %v210
    %212 = vmatprep.mubr.f32.mxu0 0.0
    %213 = vmatmul.mubr.f32.gmra.mxu0 %v109
    %v214 = vpop.f32.mrf.mxu0
    %v215 = vadd.f32 0.0, %v214
    %v216 = vpop.f32.mrf.mxu0
    %v217 = vadd.f32 0.0, %v216
    %218 = vdwg.mxu0
    %v219 = vld [vmem:[#allocation9] sm:$0xff]
    %v220 = vld [vmem:[#allocation9 + $0x8] sm:$0xff]
    %v221 = vld [vmem:[#allocation9 + $0x10] sm:$0xff]
    %v222 = vld [vmem:[#allocation9 + $0x18] sm:$0xff]
    %v223 = vld [vmem:[#allocation9 + $0x20] sm:$0xff]
    %v224 = vld [vmem:[#allocation9 + $0x28] sm:$0xff]
    %v225 = vld [vmem:[#allocation9 + $0x30] sm:$0xff]
    %v226 = vld [vmem:[#allocation9 + $0x38] sm:$0xff]
    %v227 = vld [vmem:[#allocation9 + $0x40] sm:$0xff]
    %v228 = vld [vmem:[#allocation9 + $0x48] sm:$0xff]
    %v229 = vld [vmem:[#allocation9 + $0x50] sm:$0xff]
    %v230 = vld [vmem:[#allocation9 + $0x58] sm:$0xff]
    %v231 = vld [vmem:[#allocation9 + $0x60] sm:$0xff]
    %v232 = vld [vmem:[#allocation9 + $0x68] sm:$0xff]
    %v233 = vld [vmem:[#allocation9 + $0x70] sm:$0xff]
    %v234 = vld [vmem:[#allocation9 + $0x78] sm:$0xff]
    %v235 = vld [vmem:[#allocation9 + $0x80] sm:$0xff]
    %v236 = vld [vmem:[#allocation9 + $0x88] sm:$0xff]
    %v237 = vld [vmem:[#allocation9 + $0x90] sm:$0xff]
    %v238 = vld [vmem:[#allocation9 + $0x98] sm:$0xff]
    %v239 = vld [vmem:[#allocation9 + $0xa0] sm:$0xff]
    %v240 = vld [vmem:[#allocation9 + $0xa8] sm:$0xff]
    %v241 = vld [vmem:[#allocation9 + $0xb0] sm:$0xff]
    %v242 = vld [vmem:[#allocation9 + $0xb8] sm:$0xff]
    %v243 = vld [vmem:[#allocation9 + $0xc0] sm:$0xff]
    %v244 = vld [vmem:[#allocation9 + $0xc8] sm:$0xff]
    %v245 = vld [vmem:[#allocation9 + $0xd0] sm:$0xff]
    %v246 = vld [vmem:[#allocation9 + $0xd8] sm:$0xff]
    %v247 = vld [vmem:[#allocation9 + $0xe0] sm:$0xff]
    %v248 = vld [vmem:[#allocation9 + $0xe8] sm:$0xff]
    %v249 = vld [vmem:[#allocation9 + $0xf0] sm:$0xff]
    %v250 = vld [vmem:[#allocation9 + $0xf8] sm:$0xff]
    %251 = vmatprep.subr.mxu0 %v250
    %252 = vmatpush1.msra.mxu0 %v249
    %253 = vmatprep.subr.mxu0 %v248
    %254 = vmatpush1.msra.mxu0 %v247
    %255 = vmatprep.subr.mxu0 %v246
    %256 = vmatpush1.msra.mxu0 %v245
    %257 = vmatprep.subr.mxu0 %v244
    %258 = vmatpush1.msra.mxu0 %v243
    %259 = vmatprep.subr.mxu0 %v242
    %260 = vmatpush1.msra.mxu0 %v241
    %261 = vmatprep.subr.mxu0 %v240
    %262 = vmatpush1.msra.mxu0 %v239
    %263 = vmatprep.subr.mxu0 %v238
    %264 = vmatpush1.msra.mxu0 %v237
    %265 = vmatprep.subr.mxu0 %v236
    %266 = vmatpush1.msra.mxu0 %v235
    %267 = vmatprep.subr.mxu0 %v234
    %268 = vmatpush1.msra.mxu0 %v233
    %269 = vmatprep.subr.mxu0 %v232
    %270 = vmatpush1.msra.mxu0 %v231
    %271 = vmatprep.subr.mxu0 %v230
    %272 = vmatpush1.msra.mxu0 %v229
    %273 = vmatprep.subr.mxu0 %v228
    %274 = vmatpush1.msra.mxu0 %v227
    %275 = vmatprep.subr.mxu0 %v226
    %276 = vmatpush1.msra.mxu0 %v225
    %277 = vmatprep.subr.mxu0 %v224
    %278 = vmatpush1.msra.mxu0 %v223
    %279 = vmatprep.subr.mxu0 %v222
    %280 = vmatpush1.msra.mxu0 %v221
    %281 = vmatprep.subr.mxu0 %v220
    %282 = vmatpush1.msra.mxu0 %v219
    %283 = vmatprep.subr.mxu0 0.0
    %284 = vmatpush2.msra.mxu0 0.0
    %285 = vmatprep.subr.mxu0 0.0
    %286 = vmatpush2.msra.mxu0 0.0
    %287 = vmatprep.subr.mxu0 0.0
    %288 = vmatpush2.msra.mxu0 0.0
    %289 = vmatprep.subr.mxu0 0.0
    %290 = vmatpush2.msra.mxu0 0.0
    %291 = vmatprep.subr.mxu0 0.0
    %292 = vmatpush2.msra.mxu0 0.0
    %293 = vmatprep.subr.mxu0 0.0
    %294 = vmatpush2.msra.mxu0 0.0
    %295 = vmatprep.subr.mxu0 0.0
    %296 = vmatpush2.msra.mxu0 0.0
    %297 = vmatprep.subr.mxu0 0.0
    %298 = vmatpush2.msra.mxu0 0.0
    %299 = vmatprep.subr.mxu0 0.0
    %300 = vmatpush2.msra.mxu0 0.0
    %301 = vmatprep.subr.mxu0 0.0
    %302 = vmatpush2.msra.mxu0 0.0
    %303 = vmatprep.subr.mxu0 0.0
    %304 = vmatpush2.msra.mxu0 0.0
    %305 = vmatprep.subr.mxu0 0.0
    %306 = vmatpush2.msra.mxu0 0.0
    %307 = vmatprep.subr.mxu0 0.0
    %308 = vmatpush2.msra.mxu0 0.0
    %309 = vmatprep.subr.mxu0 0.0
    %310 = vmatpush2.msra.mxu0 0.0
    %311 = vmatprep.subr.mxu0 0.0
    %312 = vmatpush2.msra.mxu0 0.0
    %313 = vmatprep.subr.mxu0 0.0
    %314 = vmatpush2.msra.mxu0 0.0
    %315 = vmatprep.mubr.f32.mxu0 0.0
    %316 = vmatmul.mubr.f32.gmra.mxu0 %v108
    %v317 = vpop.f32.mrf.mxu0
    %v318 = vadd.f32 0.0, %v317
    %v319 = vpop.f32.mrf.mxu0
    %v320 = vadd.f32 0.0, %v319
    %321 = vmatprep.mubr.f32.mxu0 0.0
    %322 = vmatmul.mubr.f32.gmra.mxu0 %v109
    %v323 = vpop.f32.mrf.mxu0
    %v324 = vadd.f32 0.0, %v323
    %v325 = vpop.f32.mrf.mxu0
    %v326 = vadd.f32 0.0, %v325
    %327 = vdwg.mxu0
    %v328 = vxor.u32 %v209, 2147483648
    %v329 = vxor.u32 %v211, 2147483648
    %v330 = vxor.u32 %v215, 2147483648
    %v331 = vxor.u32 %v217, 2147483648
    %v332 = vmul.f32 %v328, 1.442695
    %v333 = vpow.pop %v332
    %v334 = vmul.f32 %v329, 1.442695
    %v335 = vpow.pop %v334
    %v336 = vmul.f32 %v330, 1.442695
    %v337 = vpow.pop %v336
    %v338 = vmul.f32 %v331, 1.442695
    %v339 = vpow.pop %v338
    %v340 = vadd.f32 %v333, 1.0
    %v341 = vadd.f32 %v335, 1.0
    %v342 = vadd.f32 %v337, 1.0
    %v343 = vadd.f32 %v339, 1.0
    %v344 = vrcp.pop %v340
    %v345 = vmul.f32 1.0, %v344
    %v346 = vrcp.pop %v341
    %v347 = vmul.f32 1.0, %v346
    %v348 = vrcp.pop %v342
    %v349 = vmul.f32 1.0, %v348
    %v350 = vrcp.pop %v343
    %v351 = vmul.f32 1.0, %v350
    %v352 = vmul.f32 %v209, %v345
    %v353 = vmul.f32 %v211, %v347
    %v354 = vmul.f32 %v215, %v349
    %v355 = vmul.f32 %v217, %v351
    %v356 = vmul.f32 %v352, %v318
    %v357 = vmul.f32 %v353, %v320
    %v358 = vmul.f32 %v354, %v324
    %v359 = vmul.f32 %v355, %v326
    %v360 = vld [vmem:[#allocation10] sm:$0xff]
    %v361 = vld [vmem:[#allocation10 + $0x8] sm:$0xff]
    %v362 = vld [vmem:[#allocation10 + $0x10] sm:$0xff]
    %v363 = vld [vmem:[#allocation10 + $0x18] sm:$0xff]
    %v364 = vld [vmem:[#allocation10 + $0x20] sm:$0xff]
    %v365 = vld [vmem:[#allocation10 + $0x28] sm:$0xff]
    %v366 = vld [vmem:[#allocation10 + $0x30] sm:$0xff]
    %v367 = vld [vmem:[#allocation10 + $0x38] sm:$0xff]
    %v368 = vld [vmem:[#allocation10 + $0x40] sm:$0xff]
    %v369 = vld [vmem:[#allocation10 + $0x48] sm:$0xff]
    %v370 = vld [vmem:[#allocation10 + $0x50] sm:$0xff]
    %v371 = vld [vmem:[#allocation10 + $0x58] sm:$0xff]
    %v372 = vld [vmem:[#allocation10 + $0x60] sm:$0xff]
    %v373 = vld [vmem:[#allocation10 + $0x68] sm:$0xff]
    %v374 = vld [vmem:[#allocation10 + $0x70] sm:$0xff]
    %v375 = vld [vmem:[#allocation10 + $0x78] sm:$0xff]
    %v376 = vld [vmem:[#allocation10 + $0x80] sm:$0xff]
    %v377 = vld [vmem:[#allocation10 + $0x88] sm:$0xff]
    %v378 = vld [vmem:[#allocation10 + $0x90] sm:$0xff]
    %v379 = vld [vmem:[#allocation10 + $0x98] sm:$0xff]
    %v380 = vld [vmem:[#allocation10 + $0xa0] sm:$0xff]
    %v381 = vld [vmem:[#allocation10 + $0xa8] sm:$0xff]
    %v382 = vld [vmem:[#allocation10 + $0xb0] sm:$0xff]
    %v383 = vld [vmem:[#allocation10 + $0xb8] sm:$0xff]
    %v384 = vld [vmem:[#allocation10 + $0xc0] sm:$0xff]
    %v385 = vld [vmem:[#allocation10 + $0xc8] sm:$0xff]
    %v386 = vld [vmem:[#allocation10 + $0xd0] sm:$0xff]
    %v387 = vld [vmem:[#allocation10 + $0xd8] sm:$0xff]
    %v388 = vld [vmem:[#allocation10 + $0xe0] sm:$0xff]
    %v389 = vld [vmem:[#allocation10 + $0xe8] sm:$0xff]
    %v390 = vld [vmem:[#allocation10 + $0xf0] sm:$0xff]
    %v391 = vld [vmem:[#allocation10 + $0xf8] sm:$0xff]
    %392 = vmatprep.subr.mxu0 0.0
    %393 = vmatpush1.msra.mxu0 %v375
    %394 = vmatprep.subr.mxu0 0.0
    %395 = vmatpush1.msra.mxu0 %v374
    %396 = vmatprep.subr.mxu0 0.0
    %397 = vmatpush1.msra.mxu0 %v373
    %398 = vmatprep.subr.mxu0 0.0
    %399 = vmatpush1.msra.mxu0 %v372
    %400 = vmatprep.subr.mxu0 0.0
    %401 = vmatpush1.msra.mxu0 %v371
    %402 = vmatprep.subr.mxu0 0.0
    %403 = vmatpush1.msra.mxu0 %v370
    %404 = vmatprep.subr.mxu0 0.0
    %405 = vmatpush1.msra.mxu0 %v369
    %406 = vmatprep.subr.mxu0 0.0
    %407 = vmatpush1.msra.mxu0 %v368
    %408 = vmatprep.subr.mxu0 0.0
    %409 = vmatpush1.msra.mxu0 %v367
    %410 = vmatprep.subr.mxu0 0.0
    %411 = vmatpush1.msra.mxu0 %v366
    %412 = vmatprep.subr.mxu0 0.0
    %413 = vmatpush1.msra.mxu0 %v365
    %414 = vmatprep.subr.mxu0 0.0
    %415 = vmatpush1.msra.mxu0 %v364
    %416 = vmatprep.subr.mxu0 0.0
    %417 = vmatpush1.msra.mxu0 %v363
    %418 = vmatprep.subr.mxu0 0.0
    %419 = vmatpush1.msra.mxu0 %v362
    %420 = vmatprep.subr.mxu0 0.0
    %421 = vmatpush1.msra.mxu0 %v361
    %422 = vmatprep.subr.mxu0 0.0
    %423 = vmatpush1.msra.mxu0 %v360
    %424 = vmatprep.subr.mxu0 0.0
    %425 = vmatpush2.msra.mxu0 %v391
    %426 = vmatprep.subr.mxu0 0.0
    %427 = vmatpush2.msra.mxu0 %v390
    %428 = vmatprep.subr.mxu0 0.0
    %429 = vmatpush2.msra.mxu0 %v389
    %430 = vmatprep.subr.mxu0 0.0
    %431 = vmatpush2.msra.mxu0 %v388
    %432 = vmatprep.subr.mxu0 0.0
    %433 = vmatpush2.msra.mxu0 %v387
    %434 = vmatprep.subr.mxu0 0.0
    %435 = vmatpush2.msra.mxu0 %v386
    %436 = vmatprep.subr.mxu0 0.0
    %437 = vmatpush2.msra.mxu0 %v385
    %438 = vmatprep.subr.mxu0 0.0
    %439 = vmatpush2.msra.mxu0 %v384
    %440 = vmatprep.subr.mxu0 0.0
    %441 = vmatpush2.msra.mxu0 %v383
    %442 = vmatprep.subr.mxu0 0.0
    %443 = vmatpush2.msra.mxu0 %v382
    %444 = vmatprep.subr.mxu0 0.0
    %445 = vmatpush2.msra.mxu0 %v381
    %446 = vmatprep.subr.mxu0 0.0
    %447 = vmatpush2.msra.mxu0 %v380
    %448 = vmatprep.subr.mxu0 0.0
    %449 = vmatpush2.msra.mxu0 %v379
    %450 = vmatprep.subr.mxu0 0.0
    %451 = vmatpush2.msra.mxu0 %v378
    %452 = vmatprep.subr.mxu0 0.0
    %453 = vmatpush2.msra.mxu0 %v377
    %454 = vmatprep.subr.mxu0 0.0
    %455 = vmatpush2.msra.mxu0 %v376
    %456 = vmatprep.mubr.f32.mxu0 %v357
    %457 = vmatmul.mubr.f32.gmra.mxu0 %v356
    %v458 = vpop.f32.mrf.mxu0
    %v459 = vadd.f32 0.0, %v458
    %v460 = vpop.f32.mrf.mxu0
    %461 = vmatprep.mubr.f32.mxu0 %v359
    %462 = vmatmul.mubr.f32.gmra.mxu0 %v358
    %v463 = vpop.f32.mrf.mxu0
    %v464 = vadd.f32 0.0, %v463
    %v465 = vpop.f32.mrf.mxu0
    %466 = vdwg.mxu0
    // Predicated region
    $region42: #{llama_mlp_tp_forward.1} parent=1 // pred_check
      %p467 = pneg %p76
    $region43: #{llama_mlp_tp_forward.1} parent=1 // pred_check_branch
      %469 = sbr.rel (%p467) target = $region45
    $region44: #{llama_mlp_tp_forward.1} parent=1 // pred_region
      %470 = vst [vmem:[#allocation3] sm:$0xff] %v459
      %471 = vst [vmem:[#allocation3 + $0x8] sm:$0xff] %v464
    $region45: #{llama_mlp_tp_forward.1} parent=1 // pred_fallthru
      _
    %p472 = scmp.gt.s32.totalorder 0, 0
    // Predicated region
    $region46: #{llama_mlp_tp_forward.1} parent=1 // pred_check
      %p473 = pneg %p472
    $region47: #{llama_mlp_tp_forward.1} parent=1 // pred_check_branch
      %475 = sbr.rel (%p473) target = $region49
    $region48: #{llama_mlp_tp_forward.1} parent=1 // pred_region
      %v476 = vld [vmem:[#allocation3] sm:$0xff]
      %v477 = vld [vmem:[#allocation3 + $0x8] sm:$0xff]
      %v478 = vadd.f32 %v476, %v459
      %v479 = vadd.f32 %v477, %v464
      %480 = vst [vmem:[#allocation3] sm:$0xff] %v478
      %481 = vst [vmem:[#allocation3 + $0x8] sm:$0xff] %v479
    $region49: #{llama_mlp_tp_forward.1} parent=1 // pred_fallthru
      _
    // Predicated region
    $region50: #{llama_mlp_tp_forward.1} parent=1 // pred_check
      %p482 = pneg %p76
    $region51: #{llama_mlp_tp_forward.1} parent=1 // pred_check_branch
      %484 = sbr.rel (%p482) target = $region53
    $region52: #{llama_mlp_tp_forward.1} parent=1 // pred_region
      %v485 = vld [vmem:[#allocation3] sm:$0xff]
      %v486 = vld [vmem:[#allocation3 + $0x8] sm:$0xff]
      %v487 = vld [vmem:[#allocation4] sm:$0xff]
      %v488 = vld [vmem:[#allocation4 + $0x8] sm:$0xff]
      %v489 = vadd.f32 %v485, %v487
      %v490 = vadd.f32 %v486, %v488
      %491 = vst [vmem:[#allocation12] sm:$0xff] %v489
      %492 = vst [vmem:[#allocation12 + $0x8] sm:$0xff] %v490
    $region53: #{llama_mlp_tp_forward.1} parent=1 // pred_fallthru
      _
    // Predicated region
    $region54: #{llama_mlp_tp_forward.1} parent=1 // pred_check
      _
    $region55: #{llama_mlp_tp_forward.1} parent=1 // pred_check_branch
      %494 = sbr.rel (0) target = $region57
    $region56: #{llama_mlp_tp_forward.1} parent=1 // pred_region
      %s496 = ssub.s32 256, 256
      %497 = vsyncadd [#allocation6], %s496
      %s498 = sshll.u32 [#allocation12], 4
      %s499 = int_to_ptr.vmem [resolvable:$true] %s498
      %504 = dma.vmem_to_hbm [thread:$0]  %s499, 256, %s5, [#allocation6], 128, 128, 8
    $region57: #{llama_mlp_tp_forward.1} parent=1 // pred_fallthru
      _
    // Predicated region
    $region58: #{llama_mlp_tp_forward.1} parent=1 // pred_check
      _
    $region59: #{llama_mlp_tp_forward.1} parent=1 // pred_check_branch
      %506 = sbr.rel (0) target = $region61
    $region60: #{llama_mlp_tp_forward.1} parent=1 // pred_region
      %507 = dma.done [#allocation6], 256
    $region61: #{llama_mlp_tp_forward.1} parent=1 // pred_fallthru
      _
    %508 = vsyncpa [#allocation5], 1
    %509 = vsyncpa [#allocation8], 1
    %510 = vsyncpa [#allocation11], 1
    %511 = vsyncpa [#allocation6], 1

</llo_original>
